<compile_context>
chip_gen: v7x
topology: tpu7x:2x2x1
jax: 0.10.0
libtpu: 0.0.40
codegen_flags: <defaults>
</compile_context>

<pallas_src>
import jax
import jax.numpy as jnp
from jax import lax
from jax.experimental import pallas as pl
from jax.experimental.pallas import tpu as pltpu

DROPOUT_P = 0.3
# keep w.p. (1 - p): keep = bits >= round(p * 2^32), bits ~ U{0, ..., 2^32-1}
DROPOUT_THRESHOLD = int(round(DROPOUT_P * (2 ** 32)))  # 1288490189
QK_SCALE = 64.0  # .div(1.0 / 64)


def attn_dropout_kernel(q_ref, k_ref, v_ref, bits_ref, o_ref, m_sc, l_sc, acc_sc):
    # q_ref: (TQ, D)  k_ref: (TK, D)  v_ref: (TK, Dv)
    # bits_ref: (TQ, TK) uint32       o_ref: (TQ, Dv)
    # scratch: m_sc (TQ,1) l_sc (TQ,1) acc_sc (TQ,Dv)  all f32
    ki = pl.program_id(2)

    @pl.when(ki == 0)
    def _():
        m_sc[...] = jnp.full(m_sc.shape, -jnp.inf, dtype=jnp.float32)
        l_sc[...] = jnp.zeros(l_sc.shape, dtype=jnp.float32)
        acc_sc[...] = jnp.zeros(acc_sc.shape, dtype=jnp.float32)

    # Fold the x64 scale into q (power of two -> exact), feed MXU directly.
    q = q_ref[...] * jnp.asarray(QK_SCALE, dtype=q_ref.dtype)
    # s = q @ k^T, contracting on the feature dim.
    s = lax.dot_general(
        q, k_ref[...],
        dimension_numbers=(((1,), (1,)), ((), ())),
        preferred_element_type=jnp.float32,
    )  # (TQ, TK), f32

    m_prev = m_sc[...]
    m_new = jnp.maximum(m_prev, jnp.max(s, axis=-1, keepdims=True))
    alpha = jnp.exp(m_prev - m_new)
    p = jnp.exp(s - m_new)  # un-normalized probs, (TQ, TK) f32

    # softmax denominator uses the UN-dropped mass (softmax-then-dropout).
    l_sc[...] = alpha * l_sc[...] + jnp.sum(p, axis=-1, keepdims=True)

    # dropout mask: integer threshold compare on raw bits (keep prob = 1 - p).
    keep = bits_ref[...] >= jnp.uint32(DROPOUT_THRESHOLD)
    p_dropped = jnp.where(keep, p, 0.0)

    acc_sc[...] = alpha * acc_sc[...] + jnp.dot(
        p_dropped.astype(v_ref.dtype), v_ref[...],
        preferred_element_type=jnp.float32,
    )
    m_sc[...] = m_new

    @pl.when(ki == pl.num_programs(2) - 1)
    def _():
        # Fuse softmax normalization with the dropout survivor scale 1/(1-p).
        # (divide is on a (TQ,1) vector only, not the full score tile)
        inv = jnp.asarray(1.0 / (1.0 - DROPOUT_P), jnp.float32) / l_sc[...]
        o_ref[...] = (acc_sc[...] * inv).astype(o_ref.dtype)


def model_forward(query, key, value, dropout_bits=None, seed=0,
                  block_q=128, block_k=512):
    """query: [B, Lq, D], key: [B, Lk, D], value: [B, Lk, Dv] -> [B, Lq, Dv]."""
    B, Lq, D = query.shape
    Bk, Lk, Dk = key.shape
    Bv, Lkv, Dv = value.shape
    assert (Bk, Dk) == (B, D) and (Bv, Lkv) == (B, Lk)

    block_q = min(block_q, Lq)
    block_k = min(block_k, Lk)
    assert Lq % block_q == 0 and Lk % block_k == 0

    if dropout_bits is None:
        dropout_bits = jax.random.bits(
            jax.random.PRNGKey(seed), (B, Lq, Lk), dtype=jnp.uint32)
    assert dropout_bits.shape == (B, Lq, Lk)

    nq = Lq // block_q
    nk = Lk // block_k
    grid = (B, nq, nk)  # reduction (k) axis last

    grid_spec = pltpu.PrefetchScalarGridSpec(
        num_scalar_prefetch=0,
        grid=grid,
        in_specs=[
            pl.BlockSpec((None, block_q, D), lambda b, qi, ki: (b, qi, 0)),
            pl.BlockSpec((None, block_k, D), lambda b, qi, ki: (b, ki, 0)),
            pl.BlockSpec((None, block_k, Dv), lambda b, qi, ki: (b, ki, 0)),
            pl.BlockSpec((None, block_q, block_k), lambda b, qi, ki: (b, qi, ki)),
        ],
        out_specs=pl.BlockSpec((None, block_q, Dv), lambda b, qi, ki: (b, qi, 0)),
        scratch_shapes=[
            pltpu.VMEM((block_q, 1), jnp.float32),    # m (running max)
            pltpu.VMEM((block_q, 1), jnp.float32),    # l (running denom)
            pltpu.VMEM((block_q, Dv), jnp.float32),   # acc (running output)
        ],
    )

    return pl.pallas_call(
        attn_dropout_kernel,
        out_shape=jax.ShapeDtypeStruct((B, Lq, Dv), query.dtype),
        grid_spec=grid_spec,
        compiler_params=pltpu.CompilerParams(
            # batch & q tiles are independent (dropout bits come from the input
            # array, so no stateful PRNG ordering constraint); k axis reduces.
            dimension_semantics=("parallel", "parallel", "arbitrary"),
            vmem_limit_bytes=48 * 1024 * 1024,
        ),
    )(query, key, value, dropout_bits)


if __name__ == "__main__":
    # Shapes consistent with the module's forward: self.key/self.value are
    # [4, 16, 256], so query's feature dim must be 256; Lq = 64.
    B, Lq, Lk, D, Dv = 4, 64, 16, 256, 256

    root = jax.random.PRNGKey(0)
    kq, kk, kv, kd = jax.random.split(root, 4)
    # torch.rand -> uniform [0, 1)
    query = jax.random.uniform(kq, (B, Lq, D), dtype=jnp.float32)
    key = jax.random.uniform(kk, (B, Lk, D), dtype=jnp.float32)
    value = jax.random.uniform(kv, (B, Lk, Dv), dtype=jnp.float32)
    bits = jax.random.bits(kd, (B, Lq, Lk), dtype=jnp.uint32)

    out = model_forward(query, key, value, dropout_bits=bits)
    out = jax.block_until_ready(out)

    # pure-JAX reference using the identical dropout bits
    qk = jnp.einsum("bqd,bkd->bqk", query, key) * QK_SCALE
    probs = jax.nn.softmax(qk, axis=-1)
    keep = bits >= jnp.uint32(DROPOUT_THRESHOLD)
    dropped = jnp.where(keep, probs / (1.0 - DROPOUT_P), 0.0)
    ref = jnp.einsum("bqk,bkd->bqd", dropped, value)

    assert out.shape == (B, Lq, Dv)
    assert jnp.isfinite(out).all()
    assert jnp.allclose(out, ref, rtol=2e-2, atol=2e-2)
    print("KERNEL_OK")
</pallas_src>

<mosaic_0001>
module attributes {stable_mosaic.version = 11 : i64} {
  func.func @attn_dropout_kernel(%arg0: i32, %arg1: i32, %arg2: i32, %arg3: memref<1x64x256xf32, #tpu.memory_space<vmem>>, %arg4: memref<1x16x256xf32, #tpu.memory_space<vmem>>, %arg5: memref<1x16x256xf32, #tpu.memory_space<vmem>>, %arg6: memref<1x64x16xi32, #tpu.memory_space<vmem>>, %arg7: memref<1x64x256xf32, #tpu.memory_space<vmem>>, %arg8: memref<64x1xf32, #tpu.memory_space<vmem>>, %arg9: memref<64x1xf32, #tpu.memory_space<vmem>>, %arg10: memref<64x256xf32, #tpu.memory_space<vmem>>) attributes {dimension_semantics = [#tpu.dimension_semantics<parallel>, #tpu.dimension_semantics<parallel>, #tpu.dimension_semantics<arbitrary>], iteration_bounds = array<i64: 4, 1, 1>, scalar_prefetch = 0 : i64, scratch_operands = 3 : i64, tpu.core_type = #tpu.core_type<tc>, window_params = [{transform_indices = @transform_0, window_bounds = array<i64: 1, 64, 256>}, {transform_indices = @transform_1, window_bounds = array<i64: 1, 16, 256>}, {transform_indices = @transform_2, window_bounds = array<i64: 1, 16, 256>}, {transform_indices = @transform_3, window_bounds = array<i64: 1, 64, 16>}, {transform_indices = @transform_4, window_bounds = array<i64: 1, 64, 256>}]} {
    %c0_i32 = arith.constant 0 : i32
    %0 = arith.cmpi eq, %arg2, %c0_i32 : i32
    %1 = arith.extui %0 : i1 to i32
    %c0_i32_0 = arith.constant 0 : i32
    %2 = arith.cmpi ne, %1, %c0_i32_0 : i32
    scf.if %2 {
      %cst_31 = arith.constant 0xFF800000 : f32
      %43 = vector.broadcast %cst_31 : f32 to vector<64x1xf32>
      %c0_32 = arith.constant 0 : index
      %c0_33 = arith.constant 0 : index
      %44 = vector.load %arg8[%c0_32, %c0_33] : memref<64x1xf32, #tpu.memory_space<vmem>>, vector<64x1xf32>
      tpu.vector_store %arg8[%c0_32, %c0_33], %43 {strides = array<i32>} : memref<64x1xf32, #tpu.memory_space<vmem>>, vector<64x1xf32>,
      %cst_34 = arith.constant 0.000000e+00 : f32
      %45 = vector.broadcast %cst_34 : f32 to vector<64x1xf32>
      %c0_35 = arith.constant 0 : index
      %c0_36 = arith.constant 0 : index
      %46 = vector.load %arg9[%c0_35, %c0_36] : memref<64x1xf32, #tpu.memory_space<vmem>>, vector<64x1xf32>
      tpu.vector_store %arg9[%c0_35, %c0_36], %45 {strides = array<i32>} : memref<64x1xf32, #tpu.memory_space<vmem>>, vector<64x1xf32>,
      %cst_37 = arith.constant 0.000000e+00 : f32
      %47 = vector.broadcast %cst_37 : f32 to vector<64x256xf32>
      %c0_38 = arith.constant 0 : index
      %c0_39 = arith.constant 0 : index
      %48 = vector.load %arg10[%c0_38, %c0_39] : memref<64x256xf32, #tpu.memory_space<vmem>>, vector<64x256xf32>
      tpu.vector_store %arg10[%c0_38, %c0_39], %47 {strides = array<i32>} : memref<64x256xf32, #tpu.memory_space<vmem>>, vector<64x256xf32>,
    } else {
    }
    %c0 = arith.constant 0 : index
    %c0_1 = arith.constant 0 : index
    %c0_2 = arith.constant 0 : index
    %3 = vector.load %arg3[%c0, %c0_1, %c0_2] : memref<1x64x256xf32, #tpu.memory_space<vmem>>, vector<1x64x256xf32>
    %4 = vector.shape_cast %3 : vector<1x64x256xf32> to vector<64x256xf32>
    %cst = arith.constant 6.400000e+01 : f32
    %5 = vector.broadcast %cst : f32 to vector<64x256xf32>
    %6 = arith.mulf %4, %5 : vector<64x256xf32>
    %c0_3 = arith.constant 0 : index
    %c0_4 = arith.constant 0 : index
    %c0_5 = arith.constant 0 : index
    %7 = vector.load %arg4[%c0_3, %c0_4, %c0_5] : memref<1x16x256xf32, #tpu.memory_space<vmem>>, vector<1x16x256xf32>
    %8 = vector.shape_cast %7 : vector<1x16x256xf32> to vector<16x256xf32>
    %cst_6 = arith.constant dense<0.000000e+00> : vector<64x16xf32>
    %9 = tpu.matmul %6, %8, %cst_6 {dimension_numbers = #tpu.dot_dimension_numbers<[1], [1], [0], [0], [0, 0, 1, 0], [], []>} : vector<64x256xf32>, vector<16x256xf32>, vector<64x16xf32> -> vector<64x16xf32>
    %c0_7 = arith.constant 0 : index
    %c0_8 = arith.constant 0 : index
    %10 = vector.load %arg8[%c0_7, %c0_8] : memref<64x1xf32, #tpu.memory_space<vmem>>, vector<64x1xf32>
    %cst_9 = arith.constant dense<0xFF800000> : vector<64xf32>
    %11 = vector.multi_reduction <maximumf>, %9, %cst_9 [1] : vector<64x16xf32> to vector<64xf32>
    %12 = vector.shape_cast %11 : vector<64xf32> to vector<64x1xf32>
    %13 = arith.maximumf %10, %12 : vector<64x1xf32>
    %14 = arith.subf %10, %13 : vector<64x1xf32>
    %15 = math.exp %14 : vector<64x1xf32>
    %16 = vector.broadcast %13 : vector<64x1xf32> to vector<64x16xf32>
    %17 = arith.subf %9, %16 : vector<64x16xf32>
    %18 = math.exp %17 : vector<64x16xf32>
    %c0_10 = arith.constant 0 : index
    %c0_11 = arith.constant 0 : index
    %19 = vector.load %arg9[%c0_10, %c0_11] : memref<64x1xf32, #tpu.memory_space<vmem>>, vector<64x1xf32>
    %20 = arith.mulf %15, %19 : vector<64x1xf32>
    %cst_12 = arith.constant dense<0.000000e+00> : vector<64xf32>
    %21 = vector.multi_reduction <add>, %18, %cst_12 [1] : vector<64x16xf32> to vector<64xf32>
    %22 = vector.shape_cast %21 : vector<64xf32> to vector<64x1xf32>
    %23 = arith.addf %20, %22 : vector<64x1xf32>
    %c0_13 = arith.constant 0 : index
    %c0_14 = arith.constant 0 : index
    %24 = vector.load %arg9[%c0_13, %c0_14] : memref<64x1xf32, #tpu.memory_space<vmem>>, vector<64x1xf32>
    tpu.vector_store %arg9[%c0_13, %c0_14], %23 {strides = array<i32>} : memref<64x1xf32, #tpu.memory_space<vmem>>, vector<64x1xf32>,
    %c0_15 = arith.constant 0 : index
    %c0_16 = arith.constant 0 : index
    %c0_17 = arith.constant 0 : index
    %25 = vector.load %arg6[%c0_15, %c0_16, %c0_17] : memref<1x64x16xi32, #tpu.memory_space<vmem>>, vector<1x64x16xi32>
    %26 = vector.shape_cast %25 : vector<1x64x16xi32> to vector<64x16xi32>
    %c1288490189_i32 = arith.constant 1288490189 : i32
    %27 = vector.broadcast %c1288490189_i32 : i32 to vector<64x16xi32>
    %28 = arith.cmpi uge, %26, %27 : vector<64x16xi32>
    %cst_18 = arith.constant 0.000000e+00 : f32
    %29 = vector.broadcast %cst_18 : f32 to vector<64x16xf32>
    %30 = arith.select %28, %18, %29 : vector<64x16xi1>, vector<64x16xf32>
    %c0_19 = arith.constant 0 : index
    %c0_20 = arith.constant 0 : index
    %31 = vector.load %arg10[%c0_19, %c0_20] : memref<64x256xf32, #tpu.memory_space<vmem>>, vector<64x256xf32>
    %32 = vector.broadcast %15 : vector<64x1xf32> to vector<64x256xf32>
    %33 = arith.mulf %32, %31 : vector<64x256xf32>
    %c0_21 = arith.constant 0 : index
    %c0_22 = arith.constant 0 : index
    %c0_23 = arith.constant 0 : index
    %34 = vector.load %arg5[%c0_21, %c0_22, %c0_23] : memref<1x16x256xf32, #tpu.memory_space<vmem>>, vector<1x16x256xf32>
    %35 = vector.shape_cast %34 : vector<1x16x256xf32> to vector<16x256xf32>
    %cst_24 = arith.constant dense<0.000000e+00> : vector<64x256xf32>
    %36 = tpu.matmul %30, %35, %cst_24 {dimension_numbers = #tpu.dot_dimension_numbers<[1], [0], [0], [1], [0, 0, 1, 1], [], []>} : vector<64x16xf32>, vector<16x256xf32>, vector<64x256xf32> -> vector<64x256xf32>
    %37 = arith.addf %33, %36 : vector<64x256xf32>
    %c0_25 = arith.constant 0 : index
    %c0_26 = arith.constant 0 : index
    %38 = vector.load %arg10[%c0_25, %c0_26] : memref<64x256xf32, #tpu.memory_space<vmem>>, vector<64x256xf32>
    tpu.vector_store %arg10[%c0_25, %c0_26], %37 {strides = array<i32>} : memref<64x256xf32, #tpu.memory_space<vmem>>, vector<64x256xf32>,
    %c0_27 = arith.constant 0 : index
    %c0_28 = arith.constant 0 : index
    %39 = vector.load %arg8[%c0_27, %c0_28] : memref<64x1xf32, #tpu.memory_space<vmem>>, vector<64x1xf32>
    tpu.vector_store %arg8[%c0_27, %c0_28], %13 {strides = array<i32>} : memref<64x1xf32, #tpu.memory_space<vmem>>, vector<64x1xf32>,
    %c0_i32_29 = arith.constant 0 : i32
    %40 = arith.cmpi eq, %arg2, %c0_i32_29 : i32
    %41 = arith.extui %40 : i1 to i32
    %c0_i32_30 = arith.constant 0 : i32
    %42 = arith.cmpi ne, %41, %c0_i32_30 : i32
    scf.if %42 {
      %c0_31 = arith.constant 0 : index
      %c0_32 = arith.constant 0 : index
      %43 = vector.load %arg9[%c0_31, %c0_32] : memref<64x1xf32, #tpu.memory_space<vmem>>, vector<64x1xf32>
      %cst_33 = arith.constant 1.42857146 : f32
      %44 = vector.broadcast %cst_33 : f32 to vector<64x1xf32>
      %45 = arith.divf %44, %43 : vector<64x1xf32>
      %c0_34 = arith.constant 0 : index
      %c0_35 = arith.constant 0 : index
      %46 = vector.load %arg10[%c0_34, %c0_35] : memref<64x256xf32, #tpu.memory_space<vmem>>, vector<64x256xf32>
      %47 = vector.broadcast %45 : vector<64x1xf32> to vector<64x256xf32>
      %48 = arith.mulf %46, %47 : vector<64x256xf32>
      %c0_36 = arith.constant 0 : index
      %c0_37 = arith.constant 0 : index
      %c0_38 = arith.constant 0 : index
      %49 = vector.load %arg7[%c0_36, %c0_37, %c0_38] : memref<1x64x256xf32, #tpu.memory_space<vmem>>, vector<1x64x256xf32>
      %50 = vector.shape_cast %49 : vector<1x64x256xf32> to vector<64x256xf32>
      %51 = vector.shape_cast %48 : vector<64x256xf32> to vector<1x64x256xf32>
      tpu.vector_store %arg7[%c0_36, %c0_37, %c0_38], %51 {strides = array<i32>} : memref<1x64x256xf32, #tpu.memory_space<vmem>>, vector<1x64x256xf32>,
    } else {
    }
    return
  }
  func.func @transform_0(%arg0: i32, %arg1: i32, %arg2: i32) -> (i32, i32, i32) {
    %c0_i32 = arith.constant 0 : i32
    %c0_i32_0 = arith.constant 0 : i32
    return %arg0, %arg1, %c0_i32 : i32, i32, i32
  }
  func.func @transform_1(%arg0: i32, %arg1: i32, %arg2: i32) -> (i32, i32, i32) {
    %c0_i32 = arith.constant 0 : i32
    %c0_i32_0 = arith.constant 0 : i32
    return %arg0, %arg2, %c0_i32 : i32, i32, i32
  }
  func.func @transform_2(%arg0: i32, %arg1: i32, %arg2: i32) -> (i32, i32, i32) {
    %c0_i32 = arith.constant 0 : i32
    %c0_i32_0 = arith.constant 0 : i32
    return %arg0, %arg2, %c0_i32 : i32, i32, i32
  }
  func.func @transform_3(%arg0: i32, %arg1: i32, %arg2: i32) -> (i32, i32, i32) {
    %c0_i32 = arith.constant 0 : i32
    return %arg0, %arg1, %arg2 : i32, i32, i32
  }
  func.func @transform_4(%arg0: i32, %arg1: i32, %arg2: i32) -> (i32, i32, i32) {
    %c0_i32 = arith.constant 0 : i32
    %c0_i32_0 = arith.constant 0 : i32
    return %arg0, %arg1, %c0_i32 : i32, i32, i32
  }
}

</mosaic_0001>

<llo_original>
// kernel: tpu_custom_call.1
$region0: #{tpu_custom_call.1}
  #allocation0 [shape = 'u32[]', space=smem, size = 0x4, offset = 0x4, fixed_abs, tag = 'smem constant byte address 0x4 - core index']
  #allocation1 [shape = 'u32[144,128]{1,0:T(1,128)}', space=vmem, size = 0x12000, scoped, tag = 'internal scratch']
  #allocation2 [shape = 'f32[64,1]{1,0:T(8,128)}', space=vmem, size = 0x8000, scoped, tag = 'scratch operand']
  #allocation3 [shape = 'f32[64,1]{1,0:T(8,128)}', space=vmem, size = 0x8000, scoped, tag = 'scratch operand']
  #allocation4 [shape = 'f32[64,256]{1,0:T(8,128)}', space=vmem, size = 0x10000, scoped, tag = 'scratch operand']
  %s0 = inlined_call_operand.hbm [shape: f32[4,64,256], index: 0, kind: input, shape index: {}]
  %s1 = inlined_call_operand.vmem [shape: f32[4,16,256], index: 1, kind: input, shape index: {}]
  %s2 = inlined_call_operand.vmem [shape: f32[4,16,256], index: 2, kind: input, shape index: {}]
  %s3 = inlined_call_operand.vmem [shape: u32[4,64,16], index: 3, kind: input, shape index: {}]
  %s4 = inlined_call_operand.hbm [shape: f32[4,64,256], index: 4, kind: output, shape index: {}]
  %s5 = sld [smem:[#allocation0]]
  $region61: #{tpu_custom_call.1} parent=0
    _
  %s7 = ssub.s32 1, %s5
  %s8 = scalar_select 0, %s7, %s5
  $region1: #{tpu_custom_call.1} parent=0
    #allocation5 [shape = 'u8[131072]{0}', space=vmem, size = 0x20000, scoped, tag = 'input window, operand 0']
    #allocation6 [shape = 's32[2]{0}', space=sflag, size = 0x8, scoped, tag = 'scoped memory for tpu_custom_call.1']
    #allocation7 [shape = 's32[2]{0}', space=sflag, size = 0x8, scoped, tag = 'scoped memory for tpu_custom_call.1']
    #allocation8 [shape = 'u8[131072]{0}', space=vmem, size = 0x20000, scoped, tag = 'output window, operand 0']
    %9 = vsyncpa [#allocation6], 0
    %s10 = scalar_lea.sflag [#allocation6], 1
    %11 = vsyncpa %s10, 0
    %12 = vsyncpa [#allocation7], 0
    %s13 = scalar_lea.sflag [#allocation7], 1
    %14 = vsyncpa %s13, 0
    loop: start=0, step=1, limit=6
    $region2: #{tpu_custom_call.1} parent=1 // loop_pre_header
      _
    $region3: #{tpu_custom_call.1} parent=1 // loop_header
      %s16 = sphi 0, %s20
      %p17 = scmp.ge.s32.totalorder %s16, 6
      %s23 = sphi 0, %s42
      %s24 = sphi 0, %s38
      %s25 = sphi 0, %s34
      %s26 = sphi 0, %s23
      %s27 = sphi 0, %s24
      %s28 = sphi 0, %s25
      %s29 = sphi 0, %s26
      %s30 = sphi 0, %s27
      %s31 = sphi 0, %s28
      %s47 = sphi 0, %s49
      %s50 = sphi 0, %s47
      %s51 = sphi 0, %s50
      %s67 = sphi 0, %s51
      %s75 = sphi 0, %s77
      %s78 = sphi 0, %s75
      %s79 = sphi 0, %s78
      %s95 = sphi 0, %s79
      %s103 = sphi 0, %s105
      %s106 = sphi 0, %s103
      %s107 = sphi 0, %s106
      %s123 = sphi 0, %s107
      %s133 = sphi 0, %s135
      %s136 = sphi 0, %s133
      %s137 = sphi 0, %s136
      %s153 = sphi 0, %s137
      %s161 = sphi 0, %s163
      %s164 = sphi 0, %s161
      %s165 = sphi 0, %s164
      %s181 = sphi 0, %s165
    $region4: #{tpu_custom_call.1} parent=1 // loop_header_branch
      %19 = sbr.rel (%p17) target = $region8
    $region5: #{tpu_custom_call.1} parent=1 // loop_body
      %s21 = ssub.s32 %s16, 1
      %s22 = ssub.s32 %s16, 2
      %s32 = sadd.s32 1, %s25
      %p33 = scmp.ge.s32.totalorder %s32, 1
      %s34 = scalar_select %p33, 0, %s32
      %s35 = sadd.s32 1, %s24
      %s36 = scalar_select %p33, %s35, %s24
      %p37 = scmp.ge.s32.totalorder %s36, 1
      %s38 = scalar_select %p37, 0, %s36
      %s39 = sadd.s32 1, %s23
      %s40 = scalar_select %p37, %s39, %s23
      %p41 = scmp.ge.s32.totalorder %s40, 4
      %s42 = scalar_select %p41, 0, %s40
      %s43 = ssub.s32 %s23, %s42
      %s44 = ssub.s32 %s24, %s38
      %s45 = sor.u32 %s43, %s44
      %p46 = scmp.eq.s32.totalorder %s45, 0
      %s48 = sadd.s32 %s47, 1
      %s49 = scalar_select %p46, %s47, %s48
      %p52 = pneg %p46
      %p53 = scmp.eq.s32.totalorder %s16, 3
      %p54 = por %p52, %p53
      %p55 = scmp.ne.s32.totalorder %s47, %s50
      %p56 = scmp.eq.s32.totalorder %s16, 0
      %p57 = por %p55, %p56
      %p58 = scmp.ne.s32.totalorder %s47, %s50
      %p59 = scmp.eq.s32.totalorder %s21, 3
      %p60 = por %p58, %p59
      %p61 = scmp.ne.s32.totalorder %s50, %s51
      %p62 = scmp.eq.s32.totalorder %s21, 0
      %p63 = por %p61, %p62
      %p64 = scmp.ne.s32.totalorder %s50, %s51
      %p65 = scmp.eq.s32.totalorder %s22, 3
      %p66 = por %p64, %p65
      %p68 = scmp.ne.s32.totalorder %s51, %s67
      %p69 = scmp.eq.s32.totalorder %s22, 0
      %p70 = por %p68, %p69
      %s71 = ssub.s32 %s23, %s42
      %s72 = ssub.s32 %s25, %s34
      %s73 = sor.u32 %s71, %s72
      %p74 = scmp.eq.s32.totalorder %s73, 0
      %s76 = sadd.s32 %s75, 1
      %s77 = scalar_select %p74, %s75, %s76
      %p80 = pneg %p74
      %p81 = scmp.eq.s32.totalorder %s16, 3
      %p82 = por %p80, %p81
      %p83 = scmp.ne.s32.totalorder %s75, %s78
      %p84 = scmp.eq.s32.totalorder %s16, 0
      %p85 = por %p83, %p84
      %p86 = scmp.ne.s32.totalorder %s75, %s78
      %p87 = scmp.eq.s32.totalorder %s21, 3
      %p88 = por %p86, %p87
      %p89 = scmp.ne.s32.totalorder %s78, %s79
      %p90 = scmp.eq.s32.totalorder %s21, 0
      %p91 = por %p89, %p90
      %p92 = scmp.ne.s32.totalorder %s78, %s79
      %p93 = scmp.eq.s32.totalorder %s22, 3
      %p94 = por %p92, %p93
      %p96 = scmp.ne.s32.totalorder %s79, %s95
      %p97 = scmp.eq.s32.totalorder %s22, 0
      %p98 = por %p96, %p97
      %s99 = ssub.s32 %s23, %s42
      %s100 = ssub.s32 %s25, %s34
      %s101 = sor.u32 %s99, %s100
      %p102 = scmp.eq.s32.totalorder %s101, 0
      %s104 = sadd.s32 %s103, 1
      %s105 = scalar_select %p102, %s103, %s104
      %p108 = pneg %p102
      %p109 = scmp.eq.s32.totalorder %s16, 3
      %p110 = por %p108, %p109
      %p111 = scmp.ne.s32.totalorder %s103, %s106
      %p112 = scmp.eq.s32.totalorder %s16, 0
      %p113 = por %p111, %p112
      %p114 = scmp.ne.s32.totalorder %s103, %s106
      %p115 = scmp.eq.s32.totalorder %s21, 3
      %p116 = por %p114, %p115
      %p117 = scmp.ne.s32.totalorder %s106, %s107
      %p118 = scmp.eq.s32.totalorder %s21, 0
      %p119 = por %p117, %p118
      %p120 = scmp.ne.s32.totalorder %s106, %s107
      %p121 = scmp.eq.s32.totalorder %s22, 3
      %p122 = por %p120, %p121
      %p124 = scmp.ne.s32.totalorder %s107, %s123
      %p125 = scmp.eq.s32.totalorder %s22, 0
      %p126 = por %p124, %p125
      %s127 = ssub.s32 %s23, %s42
      %s128 = ssub.s32 %s24, %s38
      %s129 = sor.u32 %s127, %s128
      %s130 = ssub.s32 %s25, %s34
      %s131 = sor.u32 %s129, %s130
      %p132 = scmp.eq.s32.totalorder %s131, 0
      %s134 = sadd.s32 %s133, 1
      %s135 = scalar_select %p132, %s133, %s134
      %p138 = pneg %p132
      %p139 = scmp.eq.s32.totalorder %s16, 3
      %p140 = por %p138, %p139
      %p141 = scmp.ne.s32.totalorder %s133, %s136
      %p142 = scmp.eq.s32.totalorder %s16, 0
      %p143 = por %p141, %p142
      %p144 = scmp.ne.s32.totalorder %s133, %s136
      %p145 = scmp.eq.s32.totalorder %s21, 3
      %p146 = por %p144, %p145
      %p147 = scmp.ne.s32.totalorder %s136, %s137
      %p148 = scmp.eq.s32.totalorder %s21, 0
      %p149 = por %p147, %p148
      %p150 = scmp.ne.s32.totalorder %s136, %s137
      %p151 = scmp.eq.s32.totalorder %s22, 3
      %p152 = por %p150, %p151
      %p154 = scmp.ne.s32.totalorder %s137, %s153
      %p155 = scmp.eq.s32.totalorder %s22, 0
      %p156 = por %p154, %p155
      %s157 = ssub.s32 %s23, %s42
      %s158 = ssub.s32 %s24, %s38
      %s159 = sor.u32 %s157, %s158
      %p160 = scmp.eq.s32.totalorder %s159, 0
      %s162 = sadd.s32 %s161, 1
      %s163 = scalar_select %p160, %s161, %s162
      %p166 = pneg %p160
      %p167 = scmp.eq.s32.totalorder %s16, 3
      %p168 = por %p166, %p167
      %p169 = scmp.ne.s32.totalorder %s161, %s164
      %p170 = scmp.eq.s32.totalorder %s16, 0
      %p171 = por %p169, %p170
      %p172 = scmp.ne.s32.totalorder %s161, %s164
      %p173 = scmp.eq.s32.totalorder %s21, 3
      %p174 = por %p172, %p173
      %p175 = scmp.ne.s32.totalorder %s164, %s165
      %p176 = scmp.eq.s32.totalorder %s21, 0
      %p177 = por %p175, %p176
      %p178 = scmp.ne.s32.totalorder %s164, %s165
      %p179 = scmp.eq.s32.totalorder %s22, 3
      %p180 = por %p178, %p179
      %p182 = scmp.ne.s32.totalorder %s165, %s181
      %p183 = scmp.eq.s32.totalorder %s22, 0
      %p184 = por %p182, %p183
      %p185 = scmp.le.s32.totalorder 1, %s16
      %p186 = scmp.lt.s32.totalorder %s16, 5
      %p187 = pnand %p185, %p186
      %p188 = pneg %p187
      // Predicated region
      $region9: #{tpu_custom_call.1} parent=5 // pred_check
        _
      $region10: #{tpu_custom_call.1} parent=5 // pred_check_branch
        %190 = sbr.rel (%p187) target = $region12
      $region11: #{tpu_custom_call.1} parent=5 // pred_region
        %s191 = ssub.s32 %s16, 1
      $region12: #{tpu_custom_call.1} parent=5 // pred_fallthru
        _
      %p192 = scmp.lt.s32.totalorder %s16, 4
      // Predicated region
      $region13: #{tpu_custom_call.1} parent=5 // pred_check
        %p193 = pneg %p192
      $region14: #{tpu_custom_call.1} parent=5 // pred_check_branch
        %195 = sbr.rel (%p193) target = $region16
      $region15: #{tpu_custom_call.1} parent=5 // pred_region
        // Predicated region
        $region17: #{tpu_custom_call.1} parent=15 // pred_check
          %p196 = pneg %p57
        $region18: #{tpu_custom_call.1} parent=15 // pred_check_branch
          %198 = sbr.rel (%p196) target = $region20
        $region19: #{tpu_custom_call.1} parent=15 // pred_region
          %s199 = sand.u32 %s47, 1
          %s200 = scalar_lea.sflag [#allocation6], %s199
          %s201 = sand.u32 %s47, 1
          %s202 = smul.addr %s201, 128
          %s203 = scalar_lea.vmem [#allocation5], %s202
          %s204 = smul.u32 8, %s24
          %s206 = ssub.s32 2048, 2048
          %207 = vsyncadd %s200, %s206
          %s208 = smul.addr %s204, 2
          %s209 = smul.addr %s23, 16
          %s210 = sadd.s32 %s208, %s209
          %s211 = smul.addr %s210, 128
          %s212 = scalar_lea.hbm %s0, %s211
          %s213 = sshll.u32 %s203, 4
          %s214 = int_to_ptr.vmem [resolvable:$true] %s213
          %219 = dma.hbm_to_vmem [thread:$0]  %s212, 2048, %s214, %s200, 256, 256, 16
        $region20: #{tpu_custom_call.1} parent=15 // pred_fallthru
          _
        // Predicated region
        $region21: #{tpu_custom_call.1} parent=15 // pred_check
          %p220 = pneg %p85
        $region22: #{tpu_custom_call.1} parent=15 // pred_check_branch
          %222 = sbr.rel (%p220) target = $region24
        $region23: #{tpu_custom_call.1} parent=15 // pred_region
          %s223 = smul.u32 2, %s25
          %p224 = scmp.lt.s32.totalorder %s23, 3
          %s225 = scalar_select %p224, %s23, 3
          %p226 = scmp.lt.s32.totalorder %s223, 1
          %s227 = scalar_select %p226, %s223, 1
          %s228 = smul.addr %s227, 2
          %s229 = smul.addr %s225, 4
          %s230 = sadd.s32 %s228, %s229
          %s231 = smul.addr %s230, 8
          %s232 = scalar_lea.vmem %s1, %s231
          %s233 = smul.u32 2, %s25
        $region24: #{tpu_custom_call.1} parent=15 // pred_fallthru
          _
        // Predicated region
        $region25: #{tpu_custom_call.1} parent=15 // pred_check
          %p234 = pneg %p113
        $region26: #{tpu_custom_call.1} parent=15 // pred_check_branch
          %236 = sbr.rel (%p234) target = $region28
        $region27: #{tpu_custom_call.1} parent=15 // pred_region
          %s237 = smul.u32 2, %s25
          %p238 = scmp.lt.s32.totalorder %s23, 3
          %s239 = scalar_select %p238, %s23, 3
          %p240 = scmp.lt.s32.totalorder %s237, 1
          %s241 = scalar_select %p240, %s237, 1
          %s242 = smul.addr %s241, 2
          %s243 = smul.addr %s239, 4
          %s244 = sadd.s32 %s242, %s243
          %s245 = smul.addr %s244, 8
          %s246 = scalar_lea.vmem %s2, %s245
          %s247 = smul.u32 2, %s25
        $region28: #{tpu_custom_call.1} parent=15 // pred_fallthru
          _
        // Predicated region
        $region29: #{tpu_custom_call.1} parent=15 // pred_check
          %p248 = pneg %p143
        $region30: #{tpu_custom_call.1} parent=15 // pred_check_branch
          %250 = sbr.rel (%p248) target = $region32
        $region31: #{tpu_custom_call.1} parent=15 // pred_region
          %s251 = smul.u32 8, %s24
          %p252 = scmp.lt.s32.totalorder %s23, 3
          %s253 = scalar_select %p252, %s23, 3
          %p254 = scmp.lt.s32.totalorder %s251, 7
          %s255 = scalar_select %p254, %s251, 7
          %p256 = scmp.lt.s32.totalorder %s25, 0
          %s257 = scalar_select %p256, %s25, 0
          %s258 = sadd.s32 %s257, %s255
          %s259 = smul.addr %s253, 8
          %s260 = sadd.s32 %s258, %s259
          %s261 = smul.addr %s260, 8
          %s262 = scalar_lea.vmem %s3, %s261
          %s263 = smul.u32 8, %s24
        $region32: #{tpu_custom_call.1} parent=15 // pred_fallthru
          _
      $region16: #{tpu_custom_call.1} parent=5 // pred_fallthru
        _
      %p264 = scmp.le.s32.totalorder 1, %s16
      %p265 = scmp.lt.s32.totalorder %s16, 5
      %p266 = pnand %p264, %p265
      %p267 = pneg %p266
      // Predicated region
      $region33: #{tpu_custom_call.1} parent=5 // pred_check
        _
      $region34: #{tpu_custom_call.1} parent=5 // pred_check_branch
        %269 = sbr.rel (%p266) target = $region36
      $region35: #{tpu_custom_call.1} parent=5 // pred_region
        %s270 = ssub.s32 %s16, 1
        %s271 = sand.u32 %s50, 1
        %s272 = scalar_lea.sflag [#allocation6], %s271
        %s273 = sand.u32 %s50, 1
        %s274 = smul.addr %s273, 128
        %s275 = scalar_lea.vmem [#allocation5], %s274
        // Predicated region
        $region37: #{tpu_custom_call.1} parent=35 // pred_check
          %p276 = pneg %p63
        $region38: #{tpu_custom_call.1} parent=35 // pred_check_branch
          %278 = sbr.rel (%p276) target = $region40
        $region39: #{tpu_custom_call.1} parent=35 // pred_region
          %279 = dma.done %s272, 2048
        $region40: #{tpu_custom_call.1} parent=35 // pred_fallthru
          _
        %s280 = sand.u32 %s50, 1
        %s281 = scalar_lea.sflag [#allocation6], %s280
        %s282 = sand.u32 %s50, 1
        %s283 = smul.addr %s282, 128
        %s284 = scalar_lea.vmem [#allocation5], %s283
        %p285 = pneg %p63
        %p286 = pneg %p60
        %s287 = smul.u32 2, %s28
        %p288 = scmp.lt.s32.totalorder %s26, 3
        %s289 = scalar_select %p288, %s26, 3
        %p290 = scmp.lt.s32.totalorder %s287, 1
        %s291 = scalar_select %p290, %s287, 1
        %s292 = smul.addr %s291, 2
        %s293 = smul.addr %s289, 4
        %s294 = sadd.s32 %s292, %s293
        %s295 = smul.addr %s294, 8
        %s296 = scalar_lea.vmem %s1, %s295
        %p297 = pneg %p91
        %p298 = pneg %p88
        %s299 = smul.u32 2, %s28
        %p300 = scmp.lt.s32.totalorder %s26, 3
        %s301 = scalar_select %p300, %s26, 3
        %p302 = scmp.lt.s32.totalorder %s299, 1
        %s303 = scalar_select %p302, %s299, 1
        %s304 = smul.addr %s303, 2
        %s305 = smul.addr %s301, 4
        %s306 = sadd.s32 %s304, %s305
        %s307 = smul.addr %s306, 8
        %s308 = scalar_lea.vmem %s2, %s307
        %p309 = pneg %p119
        %p310 = pneg %p116
        %s311 = smul.u32 8, %s27
        %p312 = scmp.lt.s32.totalorder %s26, 3
        %s313 = scalar_select %p312, %s26, 3
        %p314 = scmp.lt.s32.totalorder %s311, 7
        %s315 = scalar_select %p314, %s311, 7
        %p316 = scmp.lt.s32.totalorder %s28, 0
        %s317 = scalar_select %p316, %s28, 0
        %s318 = sadd.s32 %s317, %s315
        %s319 = smul.addr %s313, 8
        %s320 = sadd.s32 %s318, %s319
        %s321 = smul.addr %s320, 8
        %s322 = scalar_lea.vmem %s3, %s321
        %p323 = pneg %p149
        %p324 = pneg %p146
        %p325 = pneg %p177
        %p326 = pneg %p174
        %s327 = sand.u32 %s164, 1
        %s328 = scalar_lea.sflag [#allocation7], %s327
        %s329 = sand.u32 %s164, 1
        %s330 = smul.addr %s329, 128
        %s331 = scalar_lea.vmem [#allocation8], %s330
        %s332 = smul.u32 8, %s27
        %s333 = smul.u32 2, %s28
        %p334 = scmp.lt.s32.totalorder %s26, 3
        %s335 = scalar_select %p334, %s26, 3
        %p336 = scmp.lt.s32.totalorder %s333, 1
        %s337 = scalar_select %p336, %s333, 1
        %s338 = smul.addr %s337, 2
        %s339 = smul.addr %s335, 4
        %s340 = sadd.s32 %s338, %s339
        %s341 = smul.addr %s340, 8
        %s342 = scalar_lea.vmem %s1, %s341
        %s343 = smul.u32 2, %s28
        %s344 = smul.u32 2, %s28
        %p345 = scmp.lt.s32.totalorder %s26, 3
        %s346 = scalar_select %p345, %s26, 3
        %p347 = scmp.lt.s32.totalorder %s344, 1
        %s348 = scalar_select %p347, %s344, 1
        %s349 = smul.addr %s348, 2
        %s350 = smul.addr %s346, 4
        %s351 = sadd.s32 %s349, %s350
        %s352 = smul.addr %s351, 8
        %s353 = scalar_lea.vmem %s2, %s352
        %s354 = smul.u32 2, %s28
        %s355 = smul.u32 8, %s27
        %p356 = scmp.lt.s32.totalorder %s26, 3
        %s357 = scalar_select %p356, %s26, 3
        %p358 = scmp.lt.s32.totalorder %s355, 7
        %s359 = scalar_select %p358, %s355, 7
        %p360 = scmp.lt.s32.totalorder %s28, 0
        %s361 = scalar_select %p360, %s28, 0
        %s362 = sadd.s32 %s361, %s359
        %s363 = smul.addr %s357, 8
        %s364 = sadd.s32 %s362, %s363
        %s365 = smul.addr %s364, 8
        %s366 = scalar_lea.vmem %s3, %s365
        %s367 = smul.u32 8, %s27
        %s368 = smul.u32 8, %s27
        %p369 = scmp.eq.s32.totalorder %s28, 0
        // Predicated region
        $region41: #{tpu_custom_call.1} parent=35 // pred_check
          %p370 = pneg %p369
        $region42: #{tpu_custom_call.1} parent=35 // pred_check_branch
          %372 = sbr.rel (%p370) target = $region44
        $region43: #{tpu_custom_call.1} parent=35 // pred_region
          %vm373 = vcmask 7168
          %374 = vst.msk [vmem:[#allocation2] sm:$0xff] %vm373, -inf
          %375 = vst.msk [vmem:[#allocation2 + $0x8] sm:$0xff] %vm373, -inf
          %376 = vst.msk [vmem:[#allocation2 + $0x10] sm:$0xff] %vm373, -inf
          %377 = vst.msk [vmem:[#allocation2 + $0x18] sm:$0xff] %vm373, -inf
          %378 = vst.msk [vmem:[#allocation2 + $0x20] sm:$0xff] %vm373, -inf
          %379 = vst.msk [vmem:[#allocation2 + $0x28] sm:$0xff] %vm373, -inf
          %380 = vst.msk [vmem:[#allocation2 + $0x30] sm:$0xff] %vm373, -inf
          %381 = vst.msk [vmem:[#allocation2 + $0x38] sm:$0xff] %vm373, -inf
          %382 = vst.msk [vmem:[#allocation3] sm:$0xff] %vm373, 0.0
          %383 = vst.msk [vmem:[#allocation3 + $0x8] sm:$0xff] %vm373, 0.0
          %384 = vst.msk [vmem:[#allocation3 + $0x10] sm:$0xff] %vm373, 0.0
          %385 = vst.msk [vmem:[#allocation3 + $0x18] sm:$0xff] %vm373, 0.0
          %386 = vst.msk [vmem:[#allocation3 + $0x20] sm:$0xff] %vm373, 0.0
          %387 = vst.msk [vmem:[#allocation3 + $0x28] sm:$0xff] %vm373, 0.0
          %388 = vst.msk [vmem:[#allocation3 + $0x30] sm:$0xff] %vm373, 0.0
          %389 = vst.msk [vmem:[#allocation3 + $0x38] sm:$0xff] %vm373, 0.0
          %390 = vst [vmem:[#allocation4] sm:$0xff] 0.0
          %391 = vst [vmem:[#allocation4 + $0x8] sm:$0xff] 0.0
          %392 = vst [vmem:[#allocation4 + $0x10] sm:$0xff] 0.0
          %393 = vst [vmem:[#allocation4 + $0x18] sm:$0xff] 0.0
          %394 = vst [vmem:[#allocation4 + $0x20] sm:$0xff] 0.0
          %395 = vst [vmem:[#allocation4 + $0x28] sm:$0xff] 0.0
          %396 = vst [vmem:[#allocation4 + $0x30] sm:$0xff] 0.0
          %397 = vst [vmem:[#allocation4 + $0x38] sm:$0xff] 0.0
          %398 = vst [vmem:[#allocation4 + $0x40] sm:$0xff] 0.0
          %399 = vst [vmem:[#allocation4 + $0x48] sm:$0xff] 0.0
          %400 = vst [vmem:[#allocation4 + $0x50] sm:$0xff] 0.0
          %401 = vst [vmem:[#allocation4 + $0x58] sm:$0xff] 0.0
          %402 = vst [vmem:[#allocation4 + $0x60] sm:$0xff] 0.0
          %403 = vst [vmem:[#allocation4 + $0x68] sm:$0xff] 0.0
          %404 = vst [vmem:[#allocation4 + $0x70] sm:$0xff] 0.0
          %405 = vst [vmem:[#allocation4 + $0x78] sm:$0xff] 0.0
        $region44: #{tpu_custom_call.1} parent=35 // pred_fallthru
          _
        %v406 = vld [vmem:[%s275] sm:$0xff]
        %v407 = vld [vmem:[%s275 + $0x8] sm:$0xff]
        %v408 = vld [vmem:[%s275 + $0x10] sm:$0xff]
        %v409 = vld [vmem:[%s275 + $0x18] sm:$0xff]
        %v410 = vld [vmem:[%s275 + $0x20] sm:$0xff]
        %v411 = vld [vmem:[%s275 + $0x28] sm:$0xff]
        %v412 = vld [vmem:[%s275 + $0x30] sm:$0xff]
        %v413 = vld [vmem:[%s275 + $0x38] sm:$0xff]
        %v414 = vld [vmem:[%s275 + $0x40] sm:$0xff]
        %v415 = vld [vmem:[%s275 + $0x48] sm:$0xff]
        %v416 = vld [vmem:[%s275 + $0x50] sm:$0xff]
        %v417 = vld [vmem:[%s275 + $0x58] sm:$0xff]
        %v418 = vld [vmem:[%s275 + $0x60] sm:$0xff]
        %v419 = vld [vmem:[%s275 + $0x68] sm:$0xff]
        %v420 = vld [vmem:[%s275 + $0x70] sm:$0xff]
        %v421 = vld [vmem:[%s275 + $0x78] sm:$0xff]
        %v422 = vmul.f32 %v406, 64.0
        %v423 = vmul.f32 %v407, 64.0
        %v424 = vmul.f32 %v408, 64.0
        %v425 = vmul.f32 %v409, 64.0
        %v426 = vmul.f32 %v410, 64.0
        %v427 = vmul.f32 %v411, 64.0
        %v428 = vmul.f32 %v412, 64.0
        %v429 = vmul.f32 %v413, 64.0
        %v430 = vmul.f32 %v414, 64.0
        %v431 = vmul.f32 %v415, 64.0
        %v432 = vmul.f32 %v416, 64.0
        %v433 = vmul.f32 %v417, 64.0
        %v434 = vmul.f32 %v418, 64.0
        %v435 = vmul.f32 %v419, 64.0
        %v436 = vmul.f32 %v420, 64.0
        %v437 = vmul.f32 %v421, 64.0
        %v438 = vld [vmem:[%s342] sm:$0xff]
        %v439 = vld [vmem:[%s342 + $0x8] sm:$0xff]
        %v440 = vld [vmem:[%s342 + $0x10] sm:$0xff]
        %v441 = vld [vmem:[%s342 + $0x18] sm:$0xff]
        %442 = vmatprep.subr.mxu0 %v439
        %443 = vmatpush1.xpose.msra.mxu0 %v438
        %444 = vmatprep.subr.mxu0 %v441
        %445 = vmatpush1.xpose.msra.mxu0 %v440
        %446 = vmatprep.subr.mxu0 0.0
        %447 = vmatpush1.xpose.msra.mxu0 0.0
        %448 = vmatprep.subr.mxu0 0.0
        %449 = vmatpush1.xpose.msra.mxu0 0.0
        %450 = vmatprep.subr.mxu0 0.0
        %451 = vmatpush1.xpose.msra.mxu0 0.0
        %452 = vmatprep.subr.mxu0 0.0
        %453 = vmatpush1.xpose.msra.mxu0 0.0
        %454 = vmatprep.subr.mxu0 0.0
        %455 = vmatpush1.xpose.msra.mxu0 0.0
        %456 = vmatprep.subr.mxu0 0.0
        %457 = vmatpush1.xpose.msra.mxu0 0.0
        %458 = vmatprep.subr.mxu0 0.0
        %459 = vmatpush1.xpose.msra.mxu0 0.0
        %460 = vmatprep.subr.mxu0 0.0
        %461 = vmatpush1.xpose.msra.mxu0 0.0
        %462 = vmatprep.subr.mxu0 0.0
        %463 = vmatpush1.xpose.msra.mxu0 0.0
        %464 = vmatprep.subr.mxu0 0.0
        %465 = vmatpush1.xpose.msra.mxu0 0.0
        %466 = vmatprep.subr.mxu0 0.0
        %467 = vmatpush1.xpose.msra.mxu0 0.0
        %468 = vmatprep.subr.mxu0 0.0
        %469 = vmatpush1.xpose.msra.mxu0 0.0
        %470 = vmatprep.subr.mxu0 0.0
        %471 = vmatpush1.xpose.msra.mxu0 0.0
        %472 = vmatprep.subr.mxu0 0.0
        %473 = vmatpush1.xpose.msra.mxu0 0.0
        %474 = vmatprep.subr.mxu0 0.0
        %475 = vmatpush1.xpose.msra.mxu0 0.0
        %476 = vmatprep.subr.mxu0 0.0
        %477 = vmatpush1.xpose.msra.mxu0 0.0
        %478 = vmatprep.subr.mxu0 0.0
        %479 = vmatpush1.xpose.msra.mxu0 0.0
        %480 = vmatprep.subr.mxu0 0.0
        %481 = vmatpush1.xpose.msra.mxu0 0.0
        %482 = vmatprep.subr.mxu0 0.0
        %483 = vmatpush1.xpose.msra.mxu0 0.0
        %484 = vmatprep.subr.mxu0 0.0
        %485 = vmatpush1.xpose.msra.mxu0 0.0
        %486 = vmatprep.subr.mxu0 0.0
        %487 = vmatpush1.xpose.msra.mxu0 0.0
        %488 = vmatprep.subr.mxu0 0.0
        %489 = vmatpush1.xpose.msra.mxu0 0.0
        %490 = vmatprep.subr.mxu0 0.0
        %491 = vmatpush1.xpose.msra.mxu0 0.0
        %492 = vmatprep.subr.mxu0 0.0
        %493 = vmatpush1.xpose.msra.mxu0 0.0
        %494 = vmatprep.subr.mxu0 0.0
        %495 = vmatpush1.xpose.msra.mxu0 0.0
        %496 = vmatprep.subr.mxu0 0.0
        %497 = vmatpush1.xpose.msra.mxu0 0.0
        %498 = vmatprep.subr.mxu0 0.0
        %499 = vmatpush1.xpose.msra.mxu0 0.0
        %500 = vmatprep.subr.mxu0 0.0
        %501 = vmatpush1.xpose.msra.mxu0 0.0
        %502 = vmatprep.subr.mxu0 0.0
        %503 = vmatpush1.xpose.msra.mxu0 0.0
        %504 = vmatprep.subr.mxu0 0.0
        %505 = vmatpush1.xpose.msra.mxu0 0.0
        %506 = vmatprep.mubr.f32.mxu0 %v423
        %507 = vmatmul.mubr.f32.gmra.mrb[0].mxu0 %v422
        %v508 = vpop.f32.mrb[0].mxu0
        %v509 = vadd.f32 0.0, %v508
        %v510 = vpop.f32.mrb[0].mxu0
        %511 = vmatprep.mubr.f32.mxu0 %v425
        %512 = vmatmul.mubr.f32.gmra.mrb[0].mxu0 %v424
        %v513 = vpop.f32.mrb[0].mxu0
        %v514 = vadd.f32 0.0, %v513
        %v515 = vpop.f32.mrb[0].mxu0
        %516 = vmatprep.mubr.f32.mxu0 %v427
        %517 = vmatmul.mubr.f32.gmra.mrb[0].mxu0 %v426
        %v518 = vpop.f32.mrb[0].mxu0
        %v519 = vadd.f32 0.0, %v518
        %v520 = vpop.f32.mrb[0].mxu0
        %521 = vmatprep.mubr.f32.mxu0 %v429
        %522 = vmatmul.mubr.f32.gmra.mrb[0].mxu0 %v428
        %v523 = vpop.f32.mrb[0].mxu0
        %v524 = vadd.f32 0.0, %v523
        %v525 = vpop.f32.mrb[0].mxu0
        %526 = vmatprep.mubr.f32.mxu0 %v431
        %527 = vmatmul.mubr.f32.gmra.mrb[0].mxu0 %v430
        %v528 = vpop.f32.mrb[0].mxu0
        %v529 = vadd.f32 0.0, %v528
        %v530 = vpop.f32.mrb[0].mxu0
        %531 = vmatprep.mubr.f32.mxu0 %v433
        %532 = vmatmul.mubr.f32.gmra.mrb[0].mxu0 %v432
        %v533 = vpop.f32.mrb[0].mxu0
        %v534 = vadd.f32 0.0, %v533
        %v535 = vpop.f32.mrb[0].mxu0
        %536 = vmatprep.mubr.f32.mxu0 %v435
        %537 = vmatmul.mubr.f32.gmra.mrb[0].mxu0 %v434
        %v538 = vpop.f32.mrb[0].mxu0
        %v539 = vadd.f32 0.0, %v538
        %v540 = vpop.f32.mrb[0].mxu0
        %541 = vmatprep.mubr.f32.mxu0 %v437
        %542 = vmatmul.mubr.f32.gmra.mrb[0].mxu0 %v436
        %v543 = vpop.f32.mrb[0].mxu0
        %v544 = vadd.f32 0.0, %v543
        %v545 = vpop.f32.mrb[0].mxu0
        %546 = vdwg.mxu0
        %v547 = vld [vmem:[#allocation2] sm:$0xff]
        %v548 = vld [vmem:[#allocation2 + $0x8] sm:$0xff]
        %v549 = vld [vmem:[#allocation2 + $0x10] sm:$0xff]
        %v550 = vld [vmem:[#allocation2 + $0x18] sm:$0xff]
        %v551 = vld [vmem:[#allocation2 + $0x20] sm:$0xff]
        %v552 = vld [vmem:[#allocation2 + $0x28] sm:$0xff]
        %v553 = vld [vmem:[#allocation2 + $0x30] sm:$0xff]
        %v554 = vld [vmem:[#allocation2 + $0x38] sm:$0xff]
        %vm555 = vcmask 130048
        %v556 = vsel %vm555, %v509, -inf
        %557 = vmax.xlane.f32.xlu0 %v556
        %v558 = vpop.xlane.xlu0 %557
        %v559 = vsel %vm555, %v514, -inf
        %560 = vmax.xlane.f32.xlu0 %v559
        %v561 = vpop.xlane.xlu0 %560
        %v562 = vsel %vm555, %v519, -inf
        %563 = vmax.xlane.f32.xlu0 %v562
        %v564 = vpop.xlane.xlu0 %563
        %v565 = vsel %vm555, %v524, -inf
        %566 = vmax.xlane.f32.xlu0 %v565
        %v567 = vpop.xlane.xlu0 %566
        %v568 = vsel %vm555, %v529, -inf
        %569 = vmax.xlane.f32.xlu0 %v568
        %v570 = vpop.xlane.xlu0 %569
        %v571 = vsel %vm555, %v534, -inf
        %572 = vmax.xlane.f32.xlu0 %v571
        %v573 = vpop.xlane.xlu0 %572
        %v574 = vsel %vm555, %v539, -inf
        %575 = vmax.xlane.f32.xlu0 %v574
        %v576 = vpop.xlane.xlu0 %575
        %v577 = vsel %vm555, %v544, -inf
        %578 = vmax.xlane.f32.xlu0 %v577
        %v579 = vpop.xlane.xlu0 %578
        %v580 = vmax.f32 %v547, %v558
        %v581 = vmax.f32 %v548, %v561
        %v582 = vmax.f32 %v549, %v564
        %v583 = vmax.f32 %v550, %v567
        %v584 = vmax.f32 %v551, %v570
        %v585 = vmax.f32 %v552, %v573
        %v586 = vmax.f32 %v553, %v576
        %v587 = vmax.f32 %v554, %v579
        %v588 = vsub.f32 %v547, %v580
        %v589 = vsub.f32 %v548, %v581
        %v590 = vsub.f32 %v549, %v582
        %v591 = vsub.f32 %v550, %v583
        %v592 = vsub.f32 %v551, %v584
        %v593 = vsub.f32 %v552, %v585
        %v594 = vsub.f32 %v553, %v586
        %v595 = vsub.f32 %v554, %v587
        %v596 = vmul.f32 %v588, 1.442695
        %v597 = vpow.pop %v596
        %v598 = vmul.f32 %v589, 1.442695
        %v599 = vpow.pop %v598
        %v600 = vmul.f32 %v590, 1.442695
        %v601 = vpow.pop %v600
        %v602 = vmul.f32 %v591, 1.442695
        %v603 = vpow.pop %v602
        %v604 = vmul.f32 %v592, 1.442695
        %v605 = vpow.pop %v604
        %v606 = vmul.f32 %v593, 1.442695
        %v607 = vpow.pop %v606
        %v608 = vmul.f32 %v594, 1.442695
        %v609 = vpow.pop %v608
        %v610 = vmul.f32 %v595, 1.442695
        %v611 = vpow.pop %v610
        %613 = vset.pattern.permute.xlu0 0
        %614 = vperm.xlu0 %613, %v580
        %v615 = vpop.permute.xlu0 %614
        %618 = vset.pattern.permute.xlu0 0
        %619 = vperm.xlu0 %618, %v581
        %v620 = vpop.permute.xlu0 %619
        %623 = vset.pattern.permute.xlu0 0
        %624 = vperm.xlu0 %623, %v582
        %v625 = vpop.permute.xlu0 %624
        %628 = vset.pattern.permute.xlu0 0
        %629 = vperm.xlu0 %628, %v583
        %v630 = vpop.permute.xlu0 %629
        %633 = vset.pattern.permute.xlu0 0
        %634 = vperm.xlu0 %633, %v584
        %v635 = vpop.permute.xlu0 %634
        %638 = vset.pattern.permute.xlu0 0
        %639 = vperm.xlu0 %638, %v585
        %v640 = vpop.permute.xlu0 %639
        %643 = vset.pattern.permute.xlu0 0
        %644 = vperm.xlu0 %643, %v586
        %v645 = vpop.permute.xlu0 %644
        %648 = vset.pattern.permute.xlu0 0
        %649 = vperm.xlu0 %648, %v587
        %v650 = vpop.permute.xlu0 %649
        %v652 = vsub.f32 %v509, %v615
        %v653 = vsub.f32 %v514, %v620
        %v654 = vsub.f32 %v519, %v625
        %v655 = vsub.f32 %v524, %v630
        %v656 = vsub.f32 %v529, %v635
        %v657 = vsub.f32 %v534, %v640
        %v658 = vsub.f32 %v539, %v645
        %v659 = vsub.f32 %v544, %v650
        %v660 = vmul.f32 %v652, 1.442695
        %v661 = vpow.pop %v660
        %v662 = vmul.f32 %v653, 1.442695
        %v663 = vpow.pop %v662
        %v664 = vmul.f32 %v654, 1.442695
        %v665 = vpow.pop %v664
        %v666 = vmul.f32 %v655, 1.442695
        %v667 = vpow.pop %v666
        %v668 = vmul.f32 %v656, 1.442695
        %v669 = vpow.pop %v668
        %v670 = vmul.f32 %v657, 1.442695
        %v671 = vpow.pop %v670
        %v672 = vmul.f32 %v658, 1.442695
        %v673 = vpow.pop %v672
        %v674 = vmul.f32 %v659, 1.442695
        %v675 = vpow.pop %v674
        %v676 = vld [vmem:[#allocation3] sm:$0xff]
        %v677 = vld [vmem:[#allocation3 + $0x8] sm:$0xff]
        %v678 = vld [vmem:[#allocation3 + $0x10] sm:$0xff]
        %v679 = vld [vmem:[#allocation3 + $0x18] sm:$0xff]
        %v680 = vld [vmem:[#allocation3 + $0x20] sm:$0xff]
        %v681 = vld [vmem:[#allocation3 + $0x28] sm:$0xff]
        %v682 = vld [vmem:[#allocation3 + $0x30] sm:$0xff]
        %v683 = vld [vmem:[#allocation3 + $0x38] sm:$0xff]
        %v684 = vmul.f32 %v597, %v676
        %v685 = vmul.f32 %v599, %v677
        %v686 = vmul.f32 %v601, %v678
        %v687 = vmul.f32 %v603, %v679
        %v688 = vmul.f32 %v605, %v680
        %v689 = vmul.f32 %v607, %v681
        %v690 = vmul.f32 %v609, %v682
        %v691 = vmul.f32 %v611, %v683
        %v692 = vsel %vm555, %v661, 0.0
        %693 = vadd.xlane.f32.xlu0 %v692
        %v694 = vpop.xlane.xlu0 %693
        %v695 = vsel %vm555, %v663, 0.0
        %696 = vadd.xlane.f32.xlu0 %v695
        %v697 = vpop.xlane.xlu0 %696
        %v698 = vsel %vm555, %v665, 0.0
        %699 = vadd.xlane.f32.xlu0 %v698
        %v700 = vpop.xlane.xlu0 %699
        %v701 = vsel %vm555, %v667, 0.0
        %702 = vadd.xlane.f32.xlu0 %v701
        %v703 = vpop.xlane.xlu0 %702
        %v704 = vsel %vm555, %v669, 0.0
        %705 = vadd.xlane.f32.xlu0 %v704
        %v706 = vpop.xlane.xlu0 %705
        %v707 = vsel %vm555, %v671, 0.0
        %708 = vadd.xlane.f32.xlu0 %v707
        %v709 = vpop.xlane.xlu0 %708
        %v710 = vsel %vm555, %v673, 0.0
        %711 = vadd.xlane.f32.xlu0 %v710
        %v712 = vpop.xlane.xlu0 %711
        %v713 = vsel %vm555, %v675, 0.0
        %714 = vadd.xlane.f32.xlu0 %v713
        %v715 = vpop.xlane.xlu0 %714
        %v716 = vadd.f32 %v684, %v694
        %v717 = vadd.f32 %v685, %v697
        %v718 = vadd.f32 %v686, %v700
        %v719 = vadd.f32 %v687, %v703
        %v720 = vadd.f32 %v688, %v706
        %v721 = vadd.f32 %v689, %v709
        %v722 = vadd.f32 %v690, %v712
        %v723 = vadd.f32 %v691, %v715
        %vm724 = vcmask 7168
        %725 = vst.msk [vmem:[#allocation3] sm:$0xff] %vm724, %v716
        %726 = vst.msk [vmem:[#allocation3 + $0x8] sm:$0xff] %vm724, %v717
        %727 = vst.msk [vmem:[#allocation3 + $0x10] sm:$0xff] %vm724, %v718
        %728 = vst.msk [vmem:[#allocation3 + $0x18] sm:$0xff] %vm724, %v719
        %729 = vst.msk [vmem:[#allocation3 + $0x20] sm:$0xff] %vm724, %v720
        %730 = vst.msk [vmem:[#allocation3 + $0x28] sm:$0xff] %vm724, %v721
        %731 = vst.msk [vmem:[#allocation3 + $0x30] sm:$0xff] %vm724, %v722
        %732 = vst.msk [vmem:[#allocation3 + $0x38] sm:$0xff] %vm724, %v723
        %v733 = vld [vmem:[%s366] sm:$0xff]
        %v734 = vld [vmem:[%s366 + $0x8] sm:$0xff]
        %v735 = vld [vmem:[%s366 + $0x10] sm:$0xff]
        %v736 = vld [vmem:[%s366 + $0x18] sm:$0xff]
        %v737 = vld [vmem:[%s366 + $0x20] sm:$0xff]
        %v738 = vld [vmem:[%s366 + $0x28] sm:$0xff]
        %v739 = vld [vmem:[%s366 + $0x30] sm:$0xff]
        %v740 = vld [vmem:[%s366 + $0x38] sm:$0xff]
        %vm741 = vcmp.ge.u32.totalorder %v733, 1288490189
        %vm742 = vcmp.ge.u32.totalorder %v734, 1288490189
        %vm743 = vcmp.ge.u32.totalorder %v735, 1288490189
        %vm744 = vcmp.ge.u32.totalorder %v736, 1288490189
        %vm745 = vcmp.ge.u32.totalorder %v737, 1288490189
        %vm746 = vcmp.ge.u32.totalorder %v738, 1288490189
        %vm747 = vcmp.ge.u32.totalorder %v739, 1288490189
        %vm748 = vcmp.ge.u32.totalorder %v740, 1288490189
        %v749 = vsel %vm741, %v661, 0.0
        %v750 = vsel %vm742, %v663, 0.0
        %v751 = vsel %vm743, %v665, 0.0
        %v752 = vsel %vm744, %v667, 0.0
        %v753 = vsel %vm745, %v669, 0.0
        %v754 = vsel %vm746, %v671, 0.0
        %v755 = vsel %vm747, %v673, 0.0
        %v756 = vsel %vm748, %v675, 0.0
        %v757 = vld [vmem:[#allocation4] sm:$0xff]
        %v758 = vld [vmem:[#allocation4 + $0x8] sm:$0xff]
        %v759 = vld [vmem:[#allocation4 + $0x10] sm:$0xff]
        %v760 = vld [vmem:[#allocation4 + $0x18] sm:$0xff]
        %v761 = vld [vmem:[#allocation4 + $0x20] sm:$0xff]
        %v762 = vld [vmem:[#allocation4 + $0x28] sm:$0xff]
        %v763 = vld [vmem:[#allocation4 + $0x30] sm:$0xff]
        %v764 = vld [vmem:[#allocation4 + $0x38] sm:$0xff]
        %v765 = vld [vmem:[#allocation4 + $0x40] sm:$0xff]
        %v766 = vld [vmem:[#allocation4 + $0x48] sm:$0xff]
        %v767 = vld [vmem:[#allocation4 + $0x50] sm:$0xff]
        %v768 = vld [vmem:[#allocation4 + $0x58] sm:$0xff]
        %v769 = vld [vmem:[#allocation4 + $0x60] sm:$0xff]
        %v770 = vld [vmem:[#allocation4 + $0x68] sm:$0xff]
        %v771 = vld [vmem:[#allocation4 + $0x70] sm:$0xff]
        %v772 = vld [vmem:[#allocation4 + $0x78] sm:$0xff]
        %774 = vset.pattern.permute.xlu0 0
        %775 = vperm.xlu0 %774, %v597
        %v776 = vpop.permute.xlu0 %775
        %779 = vset.pattern.permute.xlu0 0
        %780 = vperm.xlu0 %779, %v599
        %v781 = vpop.permute.xlu0 %780
        %784 = vset.pattern.permute.xlu0 0
        %785 = vperm.xlu0 %784, %v601
        %v786 = vpop.permute.xlu0 %785
        %789 = vset.pattern.permute.xlu0 0
        %790 = vperm.xlu0 %789, %v603
        %v791 = vpop.permute.xlu0 %790
        %794 = vset.pattern.permute.xlu0 0
        %795 = vperm.xlu0 %794, %v605
        %v796 = vpop.permute.xlu0 %795
        %799 = vset.pattern.permute.xlu0 0
        %800 = vperm.xlu0 %799, %v607
        %v801 = vpop.permute.xlu0 %800
        %804 = vset.pattern.permute.xlu0 0
        %805 = vperm.xlu0 %804, %v609
        %v806 = vpop.permute.xlu0 %805
        %809 = vset.pattern.permute.xlu0 0
        %810 = vperm.xlu0 %809, %v611
        %v811 = vpop.permute.xlu0 %810
        %v813 = vmul.f32 %v776, %v757
        %v814 = vmul.f32 %v776, %v758
        %v815 = vmul.f32 %v781, %v759
        %v816 = vmul.f32 %v781, %v760
        %v817 = vmul.f32 %v786, %v761
        %v818 = vmul.f32 %v786, %v762
        %v819 = vmul.f32 %v791, %v763
        %v820 = vmul.f32 %v791, %v764
        %v821 = vmul.f32 %v796, %v765
        %v822 = vmul.f32 %v796, %v766
        %v823 = vmul.f32 %v801, %v767
        %v824 = vmul.f32 %v801, %v768
        %v825 = vmul.f32 %v806, %v769
        %v826 = vmul.f32 %v806, %v770
        %v827 = vmul.f32 %v811, %v771
        %v828 = vmul.f32 %v811, %v772
        %v829 = vld [vmem:[%s353] sm:$0xff]
        %v830 = vld [vmem:[%s353 + $0x8] sm:$0xff]
        %v831 = vld [vmem:[%s353 + $0x10] sm:$0xff]
        %v832 = vld [vmem:[%s353 + $0x18] sm:$0xff]
        %v834 = vsel %vm555, %v749, 0
        %v837 = vsel %vm555, %v750, 0
        %v840 = vsel %vm555, %v751, 0
        %v843 = vsel %vm555, %v752, 0
        %v846 = vsel %vm555, %v753, 0
        %v849 = vsel %vm555, %v754, 0
        %v852 = vsel %vm555, %v755, 0
        %v855 = vsel %vm555, %v756, 0
        %857 = vmatprep.subr.mxu0 %v830
        %858 = vmatpush1.msra.mxu0 %v829
        %859 = vmatprep.subr.mxu0 %v832
        %860 = vmatpush1.msra.mxu0 %v831
        %861 = vmatprep.subr.mxu0 0.0
        %862 = vmatpush1.msra.mxu0 0.0
        %863 = vmatprep.subr.mxu0 0.0
        %864 = vmatpush1.msra.mxu0 0.0
        %865 = vmatprep.subr.mxu0 0.0
        %866 = vmatpush1.msra.mxu0 0.0
        %867 = vmatprep.subr.mxu0 0.0
        %868 = vmatpush1.msra.mxu0 0.0
        %869 = vmatprep.subr.mxu0 0.0
        %870 = vmatpush1.msra.mxu0 0.0
        %871 = vmatprep.subr.mxu0 0.0
        %872 = vmatpush1.msra.mxu0 0.0
        %873 = vmatprep.subr.mxu0 0.0
        %874 = vmatpush1.msra.mxu0 0.0
        %875 = vmatprep.subr.mxu0 0.0
        %876 = vmatpush1.msra.mxu0 0.0
        %877 = vmatprep.subr.mxu0 0.0
        %878 = vmatpush1.msra.mxu0 0.0
        %879 = vmatprep.subr.mxu0 0.0
        %880 = vmatpush1.msra.mxu0 0.0
        %881 = vmatprep.subr.mxu0 0.0
        %882 = vmatpush1.msra.mxu0 0.0
        %883 = vmatprep.subr.mxu0 0.0
        %884 = vmatpush1.msra.mxu0 0.0
        %885 = vmatprep.subr.mxu0 0.0
        %886 = vmatpush1.msra.mxu0 0.0
        %887 = vmatprep.subr.mxu0 0.0
        %888 = vmatpush1.msra.mxu0 0.0
        %889 = vmatprep.subr.mxu0 0.0
        %890 = vmatpush1.msra.mxu0 0.0
        %891 = vmatprep.subr.mxu0 0.0
        %892 = vmatpush1.msra.mxu0 0.0
        %893 = vmatprep.subr.mxu0 0.0
        %894 = vmatpush1.msra.mxu0 0.0
        %895 = vmatprep.subr.mxu0 0.0
        %896 = vmatpush1.msra.mxu0 0.0
        %897 = vmatprep.subr.mxu0 0.0
        %898 = vmatpush1.msra.mxu0 0.0
        %899 = vmatprep.subr.mxu0 0.0
        %900 = vmatpush1.msra.mxu0 0.0
        %901 = vmatprep.subr.mxu0 0.0
        %902 = vmatpush1.msra.mxu0 0.0
        %903 = vmatprep.subr.mxu0 0.0
        %904 = vmatpush1.msra.mxu0 0.0
        %905 = vmatprep.subr.mxu0 0.0
        %906 = vmatpush1.msra.mxu0 0.0
        %907 = vmatprep.subr.mxu0 0.0
        %908 = vmatpush1.msra.mxu0 0.0
        %909 = vmatprep.subr.mxu0 0.0
        %910 = vmatpush1.msra.mxu0 0.0
        %911 = vmatprep.subr.mxu0 0.0
        %912 = vmatpush1.msra.mxu0 0.0
        %913 = vmatprep.subr.mxu0 0.0
        %914 = vmatpush1.msra.mxu0 0.0
        %915 = vmatprep.subr.mxu0 0.0
        %916 = vmatpush1.msra.mxu0 0.0
        %917 = vmatprep.subr.mxu0 0.0
        %918 = vmatpush1.msra.mxu0 0.0
        %919 = vmatprep.subr.mxu0 0.0
        %920 = vmatpush1.msra.mxu0 0.0
        %921 = vmatprep.mubr.f32.mxu0 0.0
        %922 = vmatmul.mubr.f32.gmra.mrb[0].mxu0 %v834
        %v923 = vpop.f32.mrb[0].mxu0
        %v924 = vadd.f32 0.0, %v923
        %v925 = vpop.f32.mrb[0].mxu0
        %v926 = vadd.f32 0.0, %v925
        %927 = vmatprep.mubr.f32.mxu0 0.0
        %928 = vmatmul.mubr.f32.gmra.mrb[0].mxu0 %v837
        %v929 = vpop.f32.mrb[0].mxu0
        %v930 = vadd.f32 0.0, %v929
        %v931 = vpop.f32.mrb[0].mxu0
        %v932 = vadd.f32 0.0, %v931
        %933 = vmatprep.mubr.f32.mxu0 0.0
        %934 = vmatmul.mubr.f32.gmra.mrb[0].mxu0 %v840
        %v935 = vpop.f32.mrb[0].mxu0
        %v936 = vadd.f32 0.0, %v935
        %v937 = vpop.f32.mrb[0].mxu0
        %v938 = vadd.f32 0.0, %v937
        %939 = vmatprep.mubr.f32.mxu0 0.0
        %940 = vmatmul.mubr.f32.gmra.mrb[0].mxu0 %v843
        %v941 = vpop.f32.mrb[0].mxu0
        %v942 = vadd.f32 0.0, %v941
        %v943 = vpop.f32.mrb[0].mxu0
        %v944 = vadd.f32 0.0, %v943
        %945 = vmatprep.mubr.f32.mxu0 0.0
        %946 = vmatmul.mubr.f32.gmra.mrb[0].mxu0 %v846
        %v947 = vpop.f32.mrb[0].mxu0
        %v948 = vadd.f32 0.0, %v947
        %v949 = vpop.f32.mrb[0].mxu0
        %v950 = vadd.f32 0.0, %v949
        %951 = vmatprep.mubr.f32.mxu0 0.0
        %952 = vmatmul.mubr.f32.gmra.mrb[0].mxu0 %v849
        %v953 = vpop.f32.mrb[0].mxu0
        %v954 = vadd.f32 0.0, %v953
        %v955 = vpop.f32.mrb[0].mxu0
        %v956 = vadd.f32 0.0, %v955
        %957 = vmatprep.mubr.f32.mxu0 0.0
        %958 = vmatmul.mubr.f32.gmra.mrb[0].mxu0 %v852
        %v959 = vpop.f32.mrb[0].mxu0
        %v960 = vadd.f32 0.0, %v959
        %v961 = vpop.f32.mrb[0].mxu0
        %v962 = vadd.f32 0.0, %v961
        %963 = vmatprep.mubr.f32.mxu0 0.0
        %964 = vmatmul.mubr.f32.gmra.mrb[0].mxu0 %v855
        %v965 = vpop.f32.mrb[0].mxu0
        %v966 = vadd.f32 0.0, %v965
        %v967 = vpop.f32.mrb[0].mxu0
        %v968 = vadd.f32 0.0, %v967
        %969 = vdwg.mxu0
        %v970 = vadd.f32 %v813, %v924
        %v971 = vadd.f32 %v814, %v926
        %v972 = vadd.f32 %v815, %v930
        %v973 = vadd.f32 %v816, %v932
        %v974 = vadd.f32 %v817, %v936
        %v975 = vadd.f32 %v818, %v938
        %v976 = vadd.f32 %v819, %v942
        %v977 = vadd.f32 %v820, %v944
        %v978 = vadd.f32 %v821, %v948
        %v979 = vadd.f32 %v822, %v950
        %v980 = vadd.f32 %v823, %v954
        %v981 = vadd.f32 %v824, %v956
        %v982 = vadd.f32 %v825, %v960
        %v983 = vadd.f32 %v826, %v962
        %v984 = vadd.f32 %v827, %v966
        %v985 = vadd.f32 %v828, %v968
        %986 = vst [vmem:[#allocation4] sm:$0xff] %v970
        %987 = vst [vmem:[#allocation4 + $0x8] sm:$0xff] %v971
        %988 = vst [vmem:[#allocation4 + $0x10] sm:$0xff] %v972
        %989 = vst [vmem:[#allocation4 + $0x18] sm:$0xff] %v973
        %990 = vst [vmem:[#allocation4 + $0x20] sm:$0xff] %v974
        %991 = vst [vmem:[#allocation4 + $0x28] sm:$0xff] %v975
        %992 = vst [vmem:[#allocation4 + $0x30] sm:$0xff] %v976
        %993 = vst [vmem:[#allocation4 + $0x38] sm:$0xff] %v977
        %994 = vst [vmem:[#allocation4 + $0x40] sm:$0xff] %v978
        %995 = vst [vmem:[#allocation4 + $0x48] sm:$0xff] %v979
        %996 = vst [vmem:[#allocation4 + $0x50] sm:$0xff] %v980
        %997 = vst [vmem:[#allocation4 + $0x58] sm:$0xff] %v981
        %998 = vst [vmem:[#allocation4 + $0x60] sm:$0xff] %v982
        %999 = vst [vmem:[#allocation4 + $0x68] sm:$0xff] %v983
        %1000 = vst [vmem:[#allocation4 + $0x70] sm:$0xff] %v984
        %1001 = vst [vmem:[#allocation4 + $0x78] sm:$0xff] %v985
        %1002 = vst.msk [vmem:[#allocation2] sm:$0xff] %vm724, %v580
        %1003 = vst.msk [vmem:[#allocation2 + $0x8] sm:$0xff] %vm724, %v581
        %1004 = vst.msk [vmem:[#allocation2 + $0x10] sm:$0xff] %vm724, %v582
        %1005 = vst.msk [vmem:[#allocation2 + $0x18] sm:$0xff] %vm724, %v583
        %1006 = vst.msk [vmem:[#allocation2 + $0x20] sm:$0xff] %vm724, %v584
        %1007 = vst.msk [vmem:[#allocation2 + $0x28] sm:$0xff] %vm724, %v585
        %1008 = vst.msk [vmem:[#allocation2 + $0x30] sm:$0xff] %vm724, %v586
        %1009 = vst.msk [vmem:[#allocation2 + $0x38] sm:$0xff] %vm724, %v587
        // Predicated region
        $region45: #{tpu_custom_call.1} parent=35 // pred_check
          %p1010 = pneg %p369
        $region46: #{tpu_custom_call.1} parent=35 // pred_check_branch
          %1012 = sbr.rel (%p1010) target = $region48
        $region47: #{tpu_custom_call.1} parent=35 // pred_region
          %v1013 = vld [vmem:[#allocation3] sm:$0xff]
          %v1014 = vld [vmem:[#allocation3 + $0x8] sm:$0xff]
          %v1015 = vld [vmem:[#allocation3 + $0x10] sm:$0xff]
          %v1016 = vld [vmem:[#allocation3 + $0x18] sm:$0xff]
          %v1017 = vld [vmem:[#allocation3 + $0x20] sm:$0xff]
          %v1018 = vld [vmem:[#allocation3 + $0x28] sm:$0xff]
          %v1019 = vld [vmem:[#allocation3 + $0x30] sm:$0xff]
          %v1020 = vld [vmem:[#allocation3 + $0x38] sm:$0xff]
          %v1021 = vrcp.pop %v1013
          %v1022 = vmul.f32 1.4285715, %v1021
          %v1023 = vrcp.pop %v1014
          %v1024 = vmul.f32 1.4285715, %v1023
          %v1025 = vrcp.pop %v1015
          %v1026 = vmul.f32 1.4285715, %v1025
          %v1027 = vrcp.pop %v1016
          %v1028 = vmul.f32 1.4285715, %v1027
          %v1029 = vrcp.pop %v1017
          %v1030 = vmul.f32 1.4285715, %v1029
          %v1031 = vrcp.pop %v1018
          %v1032 = vmul.f32 1.4285715, %v1031
          %v1033 = vrcp.pop %v1019
          %v1034 = vmul.f32 1.4285715, %v1033
          %v1035 = vrcp.pop %v1020
          %v1036 = vmul.f32 1.4285715, %v1035
          %v1037 = vld [vmem:[#allocation4] sm:$0xff]
          %v1038 = vld [vmem:[#allocation4 + $0x8] sm:$0xff]
          %v1039 = vld [vmem:[#allocation4 + $0x10] sm:$0xff]
          %v1040 = vld [vmem:[#allocation4 + $0x18] sm:$0xff]
          %v1041 = vld [vmem:[#allocation4 + $0x20] sm:$0xff]
          %v1042 = vld [vmem:[#allocation4 + $0x28] sm:$0xff]
          %v1043 = vld [vmem:[#allocation4 + $0x30] sm:$0xff]
          %v1044 = vld [vmem:[#allocation4 + $0x38] sm:$0xff]
          %v1045 = vld [vmem:[#allocation4 + $0x40] sm:$0xff]
          %v1046 = vld [vmem:[#allocation4 + $0x48] sm:$0xff]
          %v1047 = vld [vmem:[#allocation4 + $0x50] sm:$0xff]
          %v1048 = vld [vmem:[#allocation4 + $0x58] sm:$0xff]
          %v1049 = vld [vmem:[#allocation4 + $0x60] sm:$0xff]
          %v1050 = vld [vmem:[#allocation4 + $0x68] sm:$0xff]
          %v1051 = vld [vmem:[#allocation4 + $0x70] sm:$0xff]
          %v1052 = vld [vmem:[#allocation4 + $0x78] sm:$0xff]
          %1054 = vset.pattern.permute.xlu0 0
          %1055 = vperm.xlu0 %1054, %v1022
          %v1056 = vpop.permute.xlu0 %1055
          %1059 = vset.pattern.permute.xlu0 0
          %1060 = vperm.xlu0 %1059, %v1024
          %v1061 = vpop.permute.xlu0 %1060
          %1064 = vset.pattern.permute.xlu0 0
          %1065 = vperm.xlu0 %1064, %v1026
          %v1066 = vpop.permute.xlu0 %1065
          %1069 = vset.pattern.permute.xlu0 0
          %1070 = vperm.xlu0 %1069, %v1028
          %v1071 = vpop.permute.xlu0 %1070
          %1074 = vset.pattern.permute.xlu0 0
          %1075 = vperm.xlu0 %1074, %v1030
          %v1076 = vpop.permute.xlu0 %1075
          %1079 = vset.pattern.permute.xlu0 0
          %1080 = vperm.xlu0 %1079, %v1032
          %v1081 = vpop.permute.xlu0 %1080
          %1084 = vset.pattern.permute.xlu0 0
          %1085 = vperm.xlu0 %1084, %v1034
          %v1086 = vpop.permute.xlu0 %1085
          %1089 = vset.pattern.permute.xlu0 0
          %1090 = vperm.xlu0 %1089, %v1036
          %v1091 = vpop.permute.xlu0 %1090
          %v1093 = vmul.f32 %v1037, %v1056
          %v1094 = vmul.f32 %v1038, %v1056
          %v1095 = vmul.f32 %v1039, %v1061
          %v1096 = vmul.f32 %v1040, %v1061
          %v1097 = vmul.f32 %v1041, %v1066
          %v1098 = vmul.f32 %v1042, %v1066
          %v1099 = vmul.f32 %v1043, %v1071
          %v1100 = vmul.f32 %v1044, %v1071
          %v1101 = vmul.f32 %v1045, %v1076
          %v1102 = vmul.f32 %v1046, %v1076
          %v1103 = vmul.f32 %v1047, %v1081
          %v1104 = vmul.f32 %v1048, %v1081
          %v1105 = vmul.f32 %v1049, %v1086
          %v1106 = vmul.f32 %v1050, %v1086
          %v1107 = vmul.f32 %v1051, %v1091
          %v1108 = vmul.f32 %v1052, %v1091
          %1109 = vst [vmem:[%s331] sm:$0xff] %v1093
          %1110 = vst [vmem:[%s331 + $0x8] sm:$0xff] %v1094
          %1111 = vst [vmem:[%s331 + $0x10] sm:$0xff] %v1095
          %1112 = vst [vmem:[%s331 + $0x18] sm:$0xff] %v1096
          %1113 = vst [vmem:[%s331 + $0x20] sm:$0xff] %v1097
          %1114 = vst [vmem:[%s331 + $0x28] sm:$0xff] %v1098
          %1115 = vst [vmem:[%s331 + $0x30] sm:$0xff] %v1099
          %1116 = vst [vmem:[%s331 + $0x38] sm:$0xff] %v1100
          %1117 = vst [vmem:[%s331 + $0x40] sm:$0xff] %v1101
          %1118 = vst [vmem:[%s331 + $0x48] sm:$0xff] %v1102
          %1119 = vst [vmem:[%s331 + $0x50] sm:$0xff] %v1103
          %1120 = vst [vmem:[%s331 + $0x58] sm:$0xff] %v1104
          %1121 = vst [vmem:[%s331 + $0x60] sm:$0xff] %v1105
          %1122 = vst [vmem:[%s331 + $0x68] sm:$0xff] %v1106
          %1123 = vst [vmem:[%s331 + $0x70] sm:$0xff] %v1107
          %1124 = vst [vmem:[%s331 + $0x78] sm:$0xff] %v1108
        $region48: #{tpu_custom_call.1} parent=35 // pred_fallthru
          _
        %s1125 = sand.u32 %s164, 1
        %s1126 = scalar_lea.sflag [#allocation7], %s1125
        %s1127 = sand.u32 %s164, 1
        %s1128 = smul.addr %s1127, 128
        %s1129 = scalar_lea.vmem [#allocation8], %s1128
        // Predicated region
        $region49: #{tpu_custom_call.1} parent=35 // pred_check
          %p1130 = pneg %p174
        $region50: #{tpu_custom_call.1} parent=35 // pred_check_branch
          %1132 = sbr.rel (%p1130) target = $region52
        $region51: #{tpu_custom_call.1} parent=35 // pred_region
          %s1133 = smul.u32 8, %s27
          %s1135 = ssub.s32 2048, 2048
          %1136 = vsyncadd %s1126, %s1135
          %s1137 = smul.addr %s1133, 2
          %s1138 = smul.addr %s26, 16
          %s1139 = sadd.s32 %s1137, %s1138
          %s1140 = smul.addr %s1139, 128
          %s1141 = scalar_lea.hbm %s4, %s1140
          %s1142 = sshll.u32 %s1129, 4
          %s1143 = int_to_ptr.vmem [resolvable:$true] %s1142
          %1148 = dma.vmem_to_hbm [thread:$0]  %s1143, 2048, %s1141, %s1126, 256, 256, 16
        $region52: #{tpu_custom_call.1} parent=35 // pred_fallthru
          _
      $region36: #{tpu_custom_call.1} parent=5 // pred_fallthru
        _
      %p1149 = scmp.le.s32.totalorder 2, %s16
      // Predicated region
      $region53: #{tpu_custom_call.1} parent=5 // pred_check
        %p1150 = pneg %p1149
      $region54: #{tpu_custom_call.1} parent=5 // pred_check_branch
        %1152 = sbr.rel (%p1150) target = $region56
      $region55: #{tpu_custom_call.1} parent=5 // pred_region
        %s1153 = ssub.s32 %s16, 2
        // Predicated region
        $region57: #{tpu_custom_call.1} parent=55 // pred_check
          %p1154 = pneg %p180
        $region58: #{tpu_custom_call.1} parent=55 // pred_check_branch
          %1156 = sbr.rel (%p1154) target = $region60
        $region59: #{tpu_custom_call.1} parent=55 // pred_region
          %s1157 = sand.u32 %s165, 1
          %s1158 = scalar_lea.sflag [#allocation7], %s1157
          %s1159 = sand.u32 %s165, 1
          %s1160 = smul.addr %s1159, 128
          %s1161 = scalar_lea.vmem [#allocation8], %s1160
          %1162 = dma.done %s1158, 2048
        $region60: #{tpu_custom_call.1} parent=55 // pred_fallthru
          _
      $region56: #{tpu_custom_call.1} parent=5 // pred_fallthru
        _
    $region6: #{tpu_custom_call.1} parent=1 // loop_footer
      %s20 = sadd.s32 1, %s16
    $region7: #{tpu_custom_call.1} parent=1 // loop_footer_branch
      %15 = sbr.rel target = $region3
    $region8: #{tpu_custom_call.1} parent=1 // loop_exit
      _
    %1163 = vsyncpa [#allocation6], 1
    %s1164 = scalar_lea.sflag [#allocation6], 1
    %1165 = vsyncpa %s1164, 1
    %1166 = vsyncpa [#allocation7], 1
    %s1167 = scalar_lea.sflag [#allocation7], 1
    %1168 = vsyncpa %s1167, 1

</llo_original>
